<compile_context>
chip_gen: v7x
topology: tpu7x:2x2x1
jax: 0.10.0
libtpu: 0.0.40
codegen_flags: <defaults>
</compile_context>

<pallas_src>
import numpy as np
import jax
import jax.numpy as jnp
from jax.experimental import pallas as pl
from jax.experimental.pallas import tpu as pltpu

TWO_PI = np.float32(2.0 * np.pi)
NCOL = 128      # padded fused feature width (lane-dense); >= max(out_size, 2*hidden)
W3_ROWS = 16    # padded row count of the transposed output layer (rows 0/1 used)


# ---------------------------------------------------------------------------
# Kernel
# ---------------------------------------------------------------------------
def vmdn_kernel(x_ref, w0_ref, wmlp_ref, w3t_ref, b_ref, b3_ref, out_ref):
    # x_ref   : (T, in_dim)       f32   batch tile (cast to bf16 in-kernel)
    # w0_ref  : (in_dim, NCOL)    bf16  compression weight (zero-padded cols)
    # wmlp_ref: (2, NCOL, NCOL)   bf16  fused hidden layers (angle|kappa)
    # w3t_ref : (W3_ROWS, NCOL)   bf16  transposed output layer, row0=mu row1=kappa
    # b_ref   : (3, NCOL)         f32   biases for layers 0..2 (zero-padded)
    # b3_ref  : (2, 1)            f32   output-layer biases (mu, log-kappa)
    # out_ref : (2, T)            f32   row 0 = mu, row 1 = kappa
    bf16 = jnp.bfloat16
    x = x_ref[...].astype(bf16)

    # compression network: Linear + ReLU (bf16 operands, f32 accumulate)
    h = jnp.dot(x, w0_ref[...], preferred_element_type=jnp.float32)
    h = jnp.maximum(h + b_ref[0:1, :], 0.0)

    # fused angle|kappa MLP (layer 1 concat, layer 2 block-diagonal)
    a = jnp.dot(h.astype(bf16), wmlp_ref[0], preferred_element_type=jnp.float32)
    a = jnp.maximum(a + b_ref[1:2, :], 0.0)
    a = jnp.dot(a.astype(bf16), wmlp_ref[1], preferred_element_type=jnp.float32)
    a = jnp.maximum(a + b_ref[2:3, :], 0.0)

    # fused output layer, computed directly transposed:
    #   (W3_ROWS, NCOL) x (T, NCOL) contracted on the last dims -> (W3_ROWS, T)
    zt = jax.lax.dot_general(
        w3t_ref[...], a.astype(bf16),
        dimension_numbers=(((1,), (1,)), ((), ())),
        preferred_element_type=jnp.float32)
    zt = zt[0:2, :] + b3_ref[...]                 # (2, T): row0 mu logit, row1 log-kappa

    mu = jnp.mod(zt[0:1, :], TWO_PI)              # torch `%` semantics: [0, 2*pi)
    kappa = jnp.exp(jnp.clip(zt[1:2, :], -3.0, 3.0))
    out_ref[...] = jnp.concatenate([mu, kappa], axis=0)


# ---------------------------------------------------------------------------
# Wrapper
# ---------------------------------------------------------------------------
def _pick_batch_tile(B):
    # Large tiles amortize the ~0.35us/step grid overhead.  Multi-tile runs need
    # a multiple of 128 (lane-dense out block); prefer an even number of tiles
    # so v7x's two TensorCores stay balanced on the single parallel axis.
    if B <= 128:
        return max(16, ((B + 15) // 16) * 16)     # single tile, 16-row aligned
    candidates = (2048, 1024, 512, 256, 128)
    for t in candidates:
        if B >= 2 * t and pl.cdiv(B, t) % 2 == 0:
            return t
    for t in candidates:
        if B >= 2 * t:
            return t
    return 128


def vmdn_forward(x, packed, *, batch_tile=None):
    """Fused VMDN forward. x: (B, in_dim) float32. Returns (mu, kappa), each (B, 1)."""
    w0, w_mlp, w3t, b_slab, b3t = packed
    B, in_dim = x.shape
    if batch_tile is None:
        batch_tile = _pick_batch_tile(B)
    assert batch_tile % 16 == 0
    n_tiles = pl.cdiv(B, batch_tile)
    if n_tiles > 1:
        assert batch_tile % 128 == 0, "multi-tile runs need a 128-aligned tile"
    b_pad = n_tiles * batch_tile

    out = pl.pallas_call(
        vmdn_kernel,
        grid=(n_tiles,),
        in_specs=[
            pl.BlockSpec((batch_tile, in_dim), lambda i: (i, 0)),
            pl.BlockSpec(w0.shape, lambda i: (0, 0)),
            pl.BlockSpec(w_mlp.shape, lambda i: (0, 0, 0)),
            pl.BlockSpec(w3t.shape, lambda i: (0, 0)),
            pl.BlockSpec(b_slab.shape, lambda i: (0, 0)),
            pl.BlockSpec(b3t.shape, lambda i: (0, 0)),
        ],
        out_specs=pl.BlockSpec((2, batch_tile), lambda i: (0, i)),
        out_shape=jax.ShapeDtypeStruct((2, b_pad), jnp.float32),
        compiler_params=pltpu.CompilerParams(
            dimension_semantics=("parallel",),
            vmem_limit_bytes=32 * 1024 * 1024),
    )(x, w0, w_mlp, w3t, b_slab, b3t)

    mu = out[0, :B].reshape(B, 1)
    kappa = out[1, :B].reshape(B, 1)
    return mu, kappa


# ---------------------------------------------------------------------------
# Parameter construction / packing
# ---------------------------------------------------------------------------
def init_params(key, in_dim, out_size, hidden):
    """PyTorch-Linear-style init (uniform +-1/sqrt(fan_in)); per-layer layout."""
    def linear(key, fan_in, fan_out):
        k_w, k_b = jax.random.split(key)
        bound = 1.0 / np.sqrt(fan_in)
        w = jax.random.uniform(k_w, (fan_in, fan_out), jnp.float32, -bound, bound)
        b = jax.random.uniform(k_b, (1, fan_out), jnp.float32, -bound, bound)
        return w, b

    keys = jax.random.split(key, 7)
    wc, bc = linear(keys[0], in_dim, out_size)          # compression
    wa1, ba1 = linear(keys[1], out_size, hidden[0])     # angle MLP
    wa2, ba2 = linear(keys[2], hidden[0], hidden[1])
    wa3, ba3 = linear(keys[3], hidden[1], 1)
    wk1, bk1 = linear(keys[4], out_size, hidden[0])     # kappa MLP
    wk2, bk2 = linear(keys[5], hidden[0], hidden[1])
    wk3, bk3 = linear(keys[6], hidden[1], 1)
    return (wc, bc, wa1, ba1, wa2, ba2, wa3, ba3,
            wk1, bk1, wk2, bk2, wk3, bk3)


def pack_params(params, in_dim, out_size, hidden):
    """Pack 14 per-layer arrays into lane-dense slabs (angle/kappa heads fused)."""
    (wc, bc, wa1, ba1, wa2, ba2, wa3, ba3,
     wk1, bk1, wk2, bk2, wk3, bk3) = params
    h1, h2 = hidden
    assert max(out_size, 2 * h1, 2 * h2) <= NCOL

    # layer 0: compression weight, zero-padded cols
    w0 = jnp.zeros((in_dim, NCOL), jnp.float32).at[:, :out_size].set(wc)
    # layer 1: fused [wa1 | wk1], zero-padded
    w1 = (jnp.zeros((NCOL, NCOL), jnp.float32)
          .at[:out_size, :h1].set(wa1)
          .at[:out_size, h1:2 * h1].set(wk1))
    # layer 2: block-diagonal [[wa2, 0], [0, wk2]]
    w2 = (jnp.zeros((NCOL, NCOL), jnp.float32)
          .at[:h1, :h2].set(wa2)
          .at[h1:2 * h1, h2:2 * h2].set(wk2))
    # layer 3 stored TRANSPOSED: row 0 <- angle head, row 1 <- kappa head
    w3t = (jnp.zeros((W3_ROWS, NCOL), jnp.float32)
           .at[0, :h2].set(wa3[:, 0])
           .at[1, h2:2 * h2].set(wk3[:, 0]))

    b0 = jnp.zeros((NCOL,), jnp.float32).at[:out_size].set(bc.reshape(-1))
    b1 = (jnp.zeros((NCOL,), jnp.float32)
          .at[:h1].set(ba1.reshape(-1)).at[h1:2 * h1].set(bk1.reshape(-1)))
    b2 = (jnp.zeros((NCOL,), jnp.float32)
          .at[:h2].set(ba2.reshape(-1)).at[h2:2 * h2].set(bk2.reshape(-1)))
    b3t = jnp.array([[float(ba3[0, 0])], [float(bk3[0, 0])]], jnp.float32)  # (2, 1)

    w_mlp = jnp.stack([w1, w2]).astype(jnp.bfloat16)   # (2, NCOL, NCOL) bf16
    b_slab = jnp.stack([b0, b1, b2])                   # (3, NCOL)       f32
    return (w0.astype(jnp.bfloat16), w_mlp, w3t.astype(jnp.bfloat16),
            b_slab, b3t)


# ---------------------------------------------------------------------------
# Pure-JAX reference (mirrors the kernel's bf16-operand / f32-accumulate math)
# ---------------------------------------------------------------------------
def vmdn_reference(x, params):
    (wc, bc, wa1, ba1, wa2, ba2, wa3, ba3,
     wk1, bk1, wk2, bk2, wk3, bk3) = params
    bf16 = jnp.bfloat16

    def mm(a, w):
        return jnp.dot(a.astype(bf16), w.astype(bf16),
                       preferred_element_type=jnp.float32)

    h = jnp.maximum(mm(x, wc) + bc, 0.0)
    a = jnp.maximum(mm(h, wa1) + ba1, 0.0)
    a = jnp.maximum(mm(a, wa2) + ba2, 0.0)
    mu = jnp.mod(mm(a, wa3) + ba3, TWO_PI)
    k = jnp.maximum(mm(h, wk1) + bk1, 0.0)
    k = jnp.maximum(mm(k, wk2) + bk2, 0.0)
    kappa = jnp.exp(jnp.clip(mm(k, wk3) + bk3, -3.0, 3.0))
    return mu, kappa


# ---------------------------------------------------------------------------
# Self-test
# ---------------------------------------------------------------------------
if __name__ == "__main__":
    key = jax.random.PRNGKey(0)
    IN_DIM, OUT_SIZE, HIDDEN = 16, 32, [32, 32]

    k_p, k_x1, k_x2, k_x3 = jax.random.split(key, 4)
    params = init_params(k_p, IN_DIM, OUT_SIZE, HIDDEN)
    packed = pack_params(params, IN_DIM, OUT_SIZE, HIDDEN)

    def check(batch, kx):
        x = jax.random.normal(kx, (batch, IN_DIM), jnp.float32)
        mu, kappa = vmdn_forward(x, packed)
        jax.block_until_ready((mu, kappa))
        mu_r, kappa_r = vmdn_reference(x, params)
        # mu is an angle mod 2*pi -> compare circular distance (wrap-safe).
        # NOTE: bf16 quantization preserves absolute error through the mod, so
        # values near the wrap boundary can legitimately differ by ~2*pi.
        d = np.abs(np.asarray(mu) - np.asarray(mu_r))
        d = np.minimum(d, 2.0 * np.pi - d)
        assert float(d.max()) < 2e-2, f"mu mismatch: {float(d.max())}"
        np.testing.assert_allclose(np.asarray(kappa), np.asarray(kappa_r),
                                   rtol=2e-2, atol=2e-2)

    check(512, k_x1)   # two 256-row tiles (even tile count for v7x)
    check(130, k_x2)   # ragged multi-tile path (last tile partially OOB)
    check(13, k_x3)    # tiny ragged batch -> single 16-row tile

    print("KERNEL_OK")
</pallas_src>

<mosaic_0001>
module attributes {stable_mosaic.version = 11 : i64} {
  func.func @vmdn_kernel(%arg0: i32, %arg1: memref<256x16xf32, #tpu.memory_space<vmem>>, %arg2: memref<16x128xbf16, #tpu.memory_space<vmem>>, %arg3: memref<2x128x128xbf16, #tpu.memory_space<vmem>>, %arg4: memref<16x128xbf16, #tpu.memory_space<vmem>>, %arg5: memref<3x128xf32, #tpu.memory_space<vmem>>, %arg6: memref<2x1xf32, #tpu.memory_space<vmem>>, %arg7: memref<2x256xf32, #tpu.memory_space<vmem>>) attributes {dimension_semantics = [#tpu.dimension_semantics<parallel>], iteration_bounds = array<i64: 2>, scalar_prefetch = 0 : i64, scratch_operands = 0 : i64, tpu.core_type = #tpu.core_type<tc>, window_params = [{transform_indices = @transform_0, window_bounds = array<i64: 256, 16>}, {pipeline_mode = #tpu.pipeline_mode<synchronous>, transform_indices = @transform_1, window_bounds = array<i64: 16, 128>}, {pipeline_mode = #tpu.pipeline_mode<synchronous>, transform_indices = @transform_2, window_bounds = array<i64: 2, 128, 128>}, {pipeline_mode = #tpu.pipeline_mode<synchronous>, transform_indices = @transform_3, window_bounds = array<i64: 16, 128>}, {pipeline_mode = #tpu.pipeline_mode<synchronous>, transform_indices = @transform_4, window_bounds = array<i64: 3, 128>}, {pipeline_mode = #tpu.pipeline_mode<synchronous>, transform_indices = @transform_5, window_bounds = array<i64: 2, 1>}, {transform_indices = @transform_6, window_bounds = array<i64: 2, 256>}]} {
    %c0 = arith.constant 0 : index
    %c0_0 = arith.constant 0 : index
    %0 = vector.load %arg1[%c0, %c0_0] : memref<256x16xf32, #tpu.memory_space<vmem>>, vector<256x16xf32>
    %1 = arith.truncf %0 : vector<256x16xf32> to vector<256x16xbf16>
    %c0_1 = arith.constant 0 : index
    %c0_2 = arith.constant 0 : index
    %2 = vector.load %arg2[%c0_1, %c0_2] : memref<16x128xbf16, #tpu.memory_space<vmem>>, vector<16x128xbf16>
    %cst = arith.constant dense<0.000000e+00> : vector<256x128xf32>
    %3 = tpu.matmul %1, %2, %cst {dimension_numbers = #tpu.dot_dimension_numbers<[1], [0], [0], [1], [0, 0, 1, 1], [], []>} : vector<256x16xbf16>, vector<16x128xbf16>, vector<256x128xf32> -> vector<256x128xf32>
    %c0_3 = arith.constant 0 : index
    %c0_4 = arith.constant 0 : index
    %4 = vector.load %arg5[%c0_3, %c0_4] : memref<3x128xf32, #tpu.memory_space<vmem>>, vector<1x128xf32>
    %5 = vector.broadcast %4 : vector<1x128xf32> to vector<256x128xf32>
    %6 = arith.addf %3, %5 : vector<256x128xf32>
    %cst_5 = arith.constant 0.000000e+00 : f32
    %7 = vector.broadcast %cst_5 : f32 to vector<256x128xf32>
    %8 = arith.maximumf %6, %7 : vector<256x128xf32>
    %9 = arith.truncf %8 : vector<256x128xf32> to vector<256x128xbf16>
    %c0_6 = arith.constant 0 : index
    %c0_7 = arith.constant 0 : index
    %c0_8 = arith.constant 0 : index
    %10 = vector.load %arg3[%c0_6, %c0_7, %c0_8] : memref<2x128x128xbf16, #tpu.memory_space<vmem>>, vector<1x128x128xbf16>
    %11 = vector.shape_cast %10 : vector<1x128x128xbf16> to vector<128x128xbf16>
    %cst_9 = arith.constant dense<0.000000e+00> : vector<256x128xf32>
    %12 = tpu.matmul %9, %11, %cst_9 {dimension_numbers = #tpu.dot_dimension_numbers<[1], [0], [0], [1], [0, 0, 1, 1], [], []>} : vector<256x128xbf16>, vector<128x128xbf16>, vector<256x128xf32> -> vector<256x128xf32>
    %c1 = arith.constant 1 : index
    %c0_10 = arith.constant 0 : index
    %13 = vector.load %arg5[%c1, %c0_10] : memref<3x128xf32, #tpu.memory_space<vmem>>, vector<1x128xf32>
    %14 = vector.broadcast %13 : vector<1x128xf32> to vector<256x128xf32>
    %15 = arith.addf %12, %14 : vector<256x128xf32>
    %cst_11 = arith.constant 0.000000e+00 : f32
    %16 = vector.broadcast %cst_11 : f32 to vector<256x128xf32>
    %17 = arith.maximumf %15, %16 : vector<256x128xf32>
    %18 = arith.truncf %17 : vector<256x128xf32> to vector<256x128xbf16>
    %c1_12 = arith.constant 1 : index
    %c0_13 = arith.constant 0 : index
    %c0_14 = arith.constant 0 : index
    %19 = vector.load %arg3[%c1_12, %c0_13, %c0_14] : memref<2x128x128xbf16, #tpu.memory_space<vmem>>, vector<1x128x128xbf16>
    %20 = vector.shape_cast %19 : vector<1x128x128xbf16> to vector<128x128xbf16>
    %cst_15 = arith.constant dense<0.000000e+00> : vector<256x128xf32>
    %21 = tpu.matmul %18, %20, %cst_15 {dimension_numbers = #tpu.dot_dimension_numbers<[1], [0], [0], [1], [0, 0, 1, 1], [], []>} : vector<256x128xbf16>, vector<128x128xbf16>, vector<256x128xf32> -> vector<256x128xf32>
    %c2 = arith.constant 2 : index
    %c0_16 = arith.constant 0 : index
    %22 = vector.load %arg5[%c2, %c0_16] : memref<3x128xf32, #tpu.memory_space<vmem>>, vector<1x128xf32>
    %23 = vector.broadcast %22 : vector<1x128xf32> to vector<256x128xf32>
    %24 = arith.addf %21, %23 : vector<256x128xf32>
    %cst_17 = arith.constant 0.000000e+00 : f32
    %25 = vector.broadcast %cst_17 : f32 to vector<256x128xf32>
    %26 = arith.maximumf %24, %25 : vector<256x128xf32>
    %c0_18 = arith.constant 0 : index
    %c0_19 = arith.constant 0 : index
    %27 = vector.load %arg4[%c0_18, %c0_19] : memref<16x128xbf16, #tpu.memory_space<vmem>>, vector<16x128xbf16>
    %28 = arith.truncf %26 : vector<256x128xf32> to vector<256x128xbf16>
    %cst_20 = arith.constant dense<0.000000e+00> : vector<16x256xf32>
    %29 = tpu.matmul %27, %28, %cst_20 {dimension_numbers = #tpu.dot_dimension_numbers<[1], [1], [0], [0], [0, 0, 1, 0], [], []>} : vector<16x128xbf16>, vector<256x128xbf16>, vector<16x256xf32> -> vector<16x256xf32>
    %30 = vector.extract_strided_slice %29 {offsets = [0, 0], sizes = [2, 256], strides = [1, 1]} : vector<16x256xf32> to vector<2x256xf32>
    %c0_21 = arith.constant 0 : index
    %c0_22 = arith.constant 0 : index
    %31 = vector.load %arg6[%c0_21, %c0_22] : memref<2x1xf32, #tpu.memory_space<vmem>>, vector<2x1xf32>
    %32 = vector.broadcast %31 : vector<2x1xf32> to vector<2x256xf32>
    %33 = arith.addf %30, %32 : vector<2x256xf32>
    %34 = vector.extract_strided_slice %33 {offsets = [0, 0], sizes = [1, 256], strides = [1, 1]} : vector<2x256xf32> to vector<1x256xf32>
    %cst_23 = arith.constant 6.28318548 : f32
    %35 = vector.broadcast %cst_23 : f32 to vector<1x256xf32>
    %36 = arith.remf %34, %35 : vector<1x256xf32>
    %cst_24 = arith.constant 0.000000e+00 : f32
    %37 = vector.broadcast %cst_24 : f32 to vector<1x256xf32>
    %38 = arith.cmpf one, %36, %37 : vector<1x256xf32>
    %cst_25 = arith.constant 0.000000e+00 : f32
    %39 = vector.broadcast %cst_25 : f32 to vector<1x256xf32>
    %40 = arith.cmpf olt, %36, %39 : vector<1x256xf32>
    %cst_26 = arith.constant 0.000000e+00 : f32
    %41 = arith.cmpf olt, %cst_23, %cst_26 : f32
    %42 = vector.broadcast %41 : i1 to vector<1x256xi1>
    %43 = vector.broadcast %42 : vector<1x256xi1> to vector<1x256xi1>
    %44 = arith.xori %40, %43 : vector<1x256xi1>
    %45 = arith.andi %44, %38 : vector<1x256xi1>
    %46 = vector.broadcast %cst_23 : f32 to vector<1x256xf32>
    %47 = arith.addf %36, %46 : vector<1x256xf32>
    %48 = arith.select %45, %47, %36 : vector<1x256xi1>, vector<1x256xf32>
    %49 = vector.extract_strided_slice %33 {offsets = [1, 0], sizes = [1, 256], strides = [1, 1]} : vector<2x256xf32> to vector<1x256xf32>
    %cst_27 = arith.constant -3.000000e+00 : f32
    %cst_28 = arith.constant 3.000000e+00 : f32
    %50 = vector.broadcast %cst_27 : f32 to vector<1x256xf32>
    %51 = arith.maximumf %50, %49 : vector<1x256xf32>
    %52 = vector.broadcast %cst_28 : f32 to vector<1x256xf32>
    %53 = arith.minimumf %52, %51 : vector<1x256xf32>
    %54 = math.exp %53 : vector<1x256xf32>
    %55 = tpu.concatenate %48, %54 in 0 : vector<1x256xf32>, vector<1x256xf32> -> vector<2x256xf32>
    %c0_29 = arith.constant 0 : index
    %c0_30 = arith.constant 0 : index
    %56 = vector.load %arg7[%c0_29, %c0_30] : memref<2x256xf32, #tpu.memory_space<vmem>>, vector<2x256xf32>
    tpu.vector_store %arg7[%c0_29, %c0_30], %55 {strides = array<i32>} : memref<2x256xf32, #tpu.memory_space<vmem>>, vector<2x256xf32>,
    return
  }
  func.func @transform_0(%arg0: i32) -> (i32, i32) {
    %c0_i32 = arith.constant 0 : i32
    %c0_i32_0 = arith.constant 0 : i32
    return %arg0, %c0_i32 : i32, i32
  }
  func.func @transform_1(%arg0: i32) -> (i32, i32) {
    %c0_i32 = arith.constant 0 : i32
    %c0_i32_0 = arith.constant 0 : i32
    %c0_i32_1 = arith.constant 0 : i32
    return %c0_i32, %c0_i32_0 : i32, i32
  }
  func.func @transform_2(%arg0: i32) -> (i32, i32, i32) {
    %c0_i32 = arith.constant 0 : i32
    %c0_i32_0 = arith.constant 0 : i32
    %c0_i32_1 = arith.constant 0 : i32
    %c0_i32_2 = arith.constant 0 : i32
    return %c0_i32, %c0_i32_0, %c0_i32_1 : i32, i32, i32
  }
  func.func @transform_3(%arg0: i32) -> (i32, i32) {
    %c0_i32 = arith.constant 0 : i32
    %c0_i32_0 = arith.constant 0 : i32
    %c0_i32_1 = arith.constant 0 : i32
    return %c0_i32, %c0_i32_0 : i32, i32
  }
  func.func @transform_4(%arg0: i32) -> (i32, i32) {
    %c0_i32 = arith.constant 0 : i32
    %c0_i32_0 = arith.constant 0 : i32
    %c0_i32_1 = arith.constant 0 : i32
    return %c0_i32, %c0_i32_0 : i32, i32
  }
  func.func @transform_5(%arg0: i32) -> (i32, i32) {
    %c0_i32 = arith.constant 0 : i32
    %c0_i32_0 = arith.constant 0 : i32
    %c0_i32_1 = arith.constant 0 : i32
    return %c0_i32, %c0_i32_0 : i32, i32
  }
  func.func @transform_6(%arg0: i32) -> (i32, i32) {
    %c0_i32 = arith.constant 0 : i32
    %c0_i32_0 = arith.constant 0 : i32
    return %c0_i32, %arg0 : i32, i32
  }
}

</mosaic_0001>

<llo_original>
// kernel: tpu_custom_call.1
$region0: #{tpu_custom_call.1}
  #allocation0 [shape = 'u32[]', space=smem, size = 0x4, offset = 0x4, fixed_abs, tag = 'smem constant byte address 0x4 - core index']
  #allocation1 [shape = 'u32[144,128]{1,0:T(1,128)}', space=vmem, size = 0x12000, scoped, tag = 'internal scratch']
  %s0 = inlined_call_operand.vmem [shape: f32[512,16], index: 0, kind: input, shape index: {}]
  %s1 = inlined_call_operand.vmem [shape: bf16[16,128], index: 1, kind: input, shape index: {}]
  %s2 = inlined_call_operand.vmem [shape: bf16[2,128,128], index: 2, kind: input, shape index: {}]
  %s3 = inlined_call_operand.vmem [shape: bf16[16,128], index: 3, kind: input, shape index: {}]
  %s4 = inlined_call_operand.vmem [shape: f32[3,128], index: 4, kind: input, shape index: {}]
  %s5 = inlined_call_operand.vmem [shape: f32[2,1], index: 5, kind: input, shape index: {}]
  %s6 = inlined_call_operand.hbm [shape: f32[2,512], index: 6, kind: output, shape index: {}]
  %s7 = sld [smem:[#allocation0]]
  $region57: #{tpu_custom_call.1} parent=0
    _
  %s9 = ssub.s32 1, %s7
  %s10 = scalar_select 0, %s9, %s7
  $region1: #{tpu_custom_call.1} parent=0
    #allocation2 [shape = 'u8[4096]{0}', space=vmem, size = 0x1000, scoped, tag = 'output window, operand 0']
    #allocation3 [shape = 's32[2]{0}', space=sflag, size = 0x8, scoped, tag = 'scoped memory for tpu_custom_call.1']
    %11 = vsyncpa [#allocation3], 0
    %s12 = scalar_lea.sflag [#allocation3], 1
    %13 = vsyncpa %s12, 0
    loop: start=0, step=1, limit=4
    $region2: #{tpu_custom_call.1} parent=1 // loop_pre_header
      _
    $region3: #{tpu_custom_call.1} parent=1 // loop_header
      %s15 = sphi 0, %s19
      %p16 = scmp.ge.s32.totalorder %s15, 4
      %s25 = sphi 0, %s27
      %s28 = sphi 0, %s25
      %s29 = sphi 0, %s28
      %s45 = sphi 0, %s29
      %s49 = sphi 0, %s49
      %s51 = sphi 0, %s49
      %s52 = sphi 0, %s51
      %s66 = sphi 0, %s52
      %s70 = sphi 0, %s70
      %s72 = sphi 0, %s70
      %s73 = sphi 0, %s72
      %s87 = sphi 0, %s73
      %s91 = sphi 0, %s91
      %s93 = sphi 0, %s91
      %s94 = sphi 0, %s93
      %s108 = sphi 0, %s94
      %s112 = sphi 0, %s112
      %s114 = sphi 0, %s112
      %s115 = sphi 0, %s114
      %s129 = sphi 0, %s115
      %s133 = sphi 0, %s133
      %s135 = sphi 0, %s133
      %s136 = sphi 0, %s135
      %s150 = sphi 0, %s136
      %s156 = sphi 0, %s158
      %s159 = sphi 0, %s156
      %s160 = sphi 0, %s159
      %s176 = sphi 0, %s160
    $region4: #{tpu_custom_call.1} parent=1 // loop_header_branch
      %18 = sbr.rel (%p16) target = $region8
    $region5: #{tpu_custom_call.1} parent=1 // loop_body
      %s20 = ssub.s32 %s15, 1
      %s21 = ssub.s32 %s15, 2
      %s22 = sadd.s32 %s15, 1
      %s23 = ssub.s32 %s15, %s22
      %p24 = scmp.eq.s32.totalorder %s23, 0
      %s26 = sadd.s32 %s25, 1
      %s27 = scalar_select %p24, %s25, %s26
      %p30 = pneg %p24
      %p31 = scmp.eq.s32.totalorder %s15, 1
      %p32 = por %p30, %p31
      %p33 = scmp.ne.s32.totalorder %s25, %s28
      %p34 = scmp.eq.s32.totalorder %s15, 0
      %p35 = por %p33, %p34
      %p36 = scmp.ne.s32.totalorder %s25, %s28
      %p37 = scmp.eq.s32.totalorder %s20, 1
      %p38 = por %p36, %p37
      %p39 = scmp.ne.s32.totalorder %s28, %s29
      %p40 = scmp.eq.s32.totalorder %s20, 0
      %p41 = por %p39, %p40
      %p42 = scmp.ne.s32.totalorder %s28, %s29
      %p43 = scmp.eq.s32.totalorder %s21, 1
      %p44 = por %p42, %p43
      %p46 = scmp.ne.s32.totalorder %s29, %s45
      %p47 = scmp.eq.s32.totalorder %s21, 0
      %p48 = por %p46, %p47
      %s50 = sadd.s32 %s49, 1
      %p53 = scmp.eq.s32.totalorder %s15, 1
      %p54 = scmp.ne.s32.totalorder %s49, %s51
      %p55 = scmp.eq.s32.totalorder %s15, 0
      %p56 = por %p54, %p55
      %p57 = scmp.ne.s32.totalorder %s49, %s51
      %p58 = scmp.eq.s32.totalorder %s20, 1
      %p59 = por %p57, %p58
      %p60 = scmp.ne.s32.totalorder %s51, %s52
      %p61 = scmp.eq.s32.totalorder %s20, 0
      %p62 = por %p60, %p61
      %p63 = scmp.ne.s32.totalorder %s51, %s52
      %p64 = scmp.eq.s32.totalorder %s21, 1
      %p65 = por %p63, %p64
      %p67 = scmp.ne.s32.totalorder %s52, %s66
      %p68 = scmp.eq.s32.totalorder %s21, 0
      %p69 = por %p67, %p68
      %s71 = sadd.s32 %s70, 1
      %p74 = scmp.eq.s32.totalorder %s15, 1
      %p75 = scmp.ne.s32.totalorder %s70, %s72
      %p76 = scmp.eq.s32.totalorder %s15, 0
      %p77 = por %p75, %p76
      %p78 = scmp.ne.s32.totalorder %s70, %s72
      %p79 = scmp.eq.s32.totalorder %s20, 1
      %p80 = por %p78, %p79
      %p81 = scmp.ne.s32.totalorder %s72, %s73
      %p82 = scmp.eq.s32.totalorder %s20, 0
      %p83 = por %p81, %p82
      %p84 = scmp.ne.s32.totalorder %s72, %s73
      %p85 = scmp.eq.s32.totalorder %s21, 1
      %p86 = por %p84, %p85
      %p88 = scmp.ne.s32.totalorder %s73, %s87
      %p89 = scmp.eq.s32.totalorder %s21, 0
      %p90 = por %p88, %p89
      %s92 = sadd.s32 %s91, 1
      %p95 = scmp.eq.s32.totalorder %s15, 1
      %p96 = scmp.ne.s32.totalorder %s91, %s93
      %p97 = scmp.eq.s32.totalorder %s15, 0
      %p98 = por %p96, %p97
      %p99 = scmp.ne.s32.totalorder %s91, %s93
      %p100 = scmp.eq.s32.totalorder %s20, 1
      %p101 = por %p99, %p100
      %p102 = scmp.ne.s32.totalorder %s93, %s94
      %p103 = scmp.eq.s32.totalorder %s20, 0
      %p104 = por %p102, %p103
      %p105 = scmp.ne.s32.totalorder %s93, %s94
      %p106 = scmp.eq.s32.totalorder %s21, 1
      %p107 = por %p105, %p106
      %p109 = scmp.ne.s32.totalorder %s94, %s108
      %p110 = scmp.eq.s32.totalorder %s21, 0
      %p111 = por %p109, %p110
      %s113 = sadd.s32 %s112, 1
      %p116 = scmp.eq.s32.totalorder %s15, 1
      %p117 = scmp.ne.s32.totalorder %s112, %s114
      %p118 = scmp.eq.s32.totalorder %s15, 0
      %p119 = por %p117, %p118
      %p120 = scmp.ne.s32.totalorder %s112, %s114
      %p121 = scmp.eq.s32.totalorder %s20, 1
      %p122 = por %p120, %p121
      %p123 = scmp.ne.s32.totalorder %s114, %s115
      %p124 = scmp.eq.s32.totalorder %s20, 0
      %p125 = por %p123, %p124
      %p126 = scmp.ne.s32.totalorder %s114, %s115
      %p127 = scmp.eq.s32.totalorder %s21, 1
      %p128 = por %p126, %p127
      %p130 = scmp.ne.s32.totalorder %s115, %s129
      %p131 = scmp.eq.s32.totalorder %s21, 0
      %p132 = por %p130, %p131
      %s134 = sadd.s32 %s133, 1
      %p137 = scmp.eq.s32.totalorder %s15, 1
      %p138 = scmp.ne.s32.totalorder %s133, %s135
      %p139 = scmp.eq.s32.totalorder %s15, 0
      %p140 = por %p138, %p139
      %p141 = scmp.ne.s32.totalorder %s133, %s135
      %p142 = scmp.eq.s32.totalorder %s20, 1
      %p143 = por %p141, %p142
      %p144 = scmp.ne.s32.totalorder %s135, %s136
      %p145 = scmp.eq.s32.totalorder %s20, 0
      %p146 = por %p144, %p145
      %p147 = scmp.ne.s32.totalorder %s135, %s136
      %p148 = scmp.eq.s32.totalorder %s21, 1
      %p149 = por %p147, %p148
      %p151 = scmp.ne.s32.totalorder %s136, %s150
      %p152 = scmp.eq.s32.totalorder %s21, 0
      %p153 = por %p151, %p152
      %s154 = ssub.s32 %s15, %s22
      %p155 = scmp.eq.s32.totalorder %s154, 0
      %s157 = sadd.s32 %s156, 1
      %s158 = scalar_select %p155, %s156, %s157
      %p161 = pneg %p155
      %p162 = scmp.eq.s32.totalorder %s15, 1
      %p163 = por %p161, %p162
      %p164 = scmp.ne.s32.totalorder %s156, %s159
      %p165 = scmp.eq.s32.totalorder %s15, 0
      %p166 = por %p164, %p165
      %p167 = scmp.ne.s32.totalorder %s156, %s159
      %p168 = scmp.eq.s32.totalorder %s20, 1
      %p169 = por %p167, %p168
      %p170 = scmp.ne.s32.totalorder %s159, %s160
      %p171 = scmp.eq.s32.totalorder %s20, 0
      %p172 = por %p170, %p171
      %p173 = scmp.ne.s32.totalorder %s159, %s160
      %p174 = scmp.eq.s32.totalorder %s21, 1
      %p175 = por %p173, %p174
      %p177 = scmp.ne.s32.totalorder %s160, %s176
      %p178 = scmp.eq.s32.totalorder %s21, 0
      %p179 = por %p177, %p178
      %p180 = scmp.le.s32.totalorder 1, %s15
      %p181 = scmp.lt.s32.totalorder %s15, 3
      %p182 = pnand %p180, %p181
      %p183 = pneg %p182
      // Predicated region
      $region9: #{tpu_custom_call.1} parent=5 // pred_check
        _
      $region10: #{tpu_custom_call.1} parent=5 // pred_check_branch
        %185 = sbr.rel (%p182) target = $region12
      $region11: #{tpu_custom_call.1} parent=5 // pred_region
        %s186 = ssub.s32 %s15, 1
        // Predicated region
        $region13: #{tpu_custom_call.1} parent=11 // pred_check
          %p187 = pneg %p62
        $region14: #{tpu_custom_call.1} parent=11 // pred_check_branch
          %189 = sbr.rel (%p187) target = $region16
        $region15: #{tpu_custom_call.1} parent=11 // pred_region
          _
        $region16: #{tpu_custom_call.1} parent=11 // pred_fallthru
          _
        // Predicated region
        $region17: #{tpu_custom_call.1} parent=11 // pred_check
          %p190 = pneg %p83
        $region18: #{tpu_custom_call.1} parent=11 // pred_check_branch
          %192 = sbr.rel (%p190) target = $region20
        $region19: #{tpu_custom_call.1} parent=11 // pred_region
          _
        $region20: #{tpu_custom_call.1} parent=11 // pred_fallthru
          _
        // Predicated region
        $region21: #{tpu_custom_call.1} parent=11 // pred_check
          %p193 = pneg %p104
        $region22: #{tpu_custom_call.1} parent=11 // pred_check_branch
          %195 = sbr.rel (%p193) target = $region24
        $region23: #{tpu_custom_call.1} parent=11 // pred_region
          _
        $region24: #{tpu_custom_call.1} parent=11 // pred_fallthru
          _
        // Predicated region
        $region25: #{tpu_custom_call.1} parent=11 // pred_check
          %p196 = pneg %p125
        $region26: #{tpu_custom_call.1} parent=11 // pred_check_branch
          %198 = sbr.rel (%p196) target = $region28
        $region27: #{tpu_custom_call.1} parent=11 // pred_region
          _
        $region28: #{tpu_custom_call.1} parent=11 // pred_fallthru
          _
        // Predicated region
        $region29: #{tpu_custom_call.1} parent=11 // pred_check
          %p199 = pneg %p146
        $region30: #{tpu_custom_call.1} parent=11 // pred_check_branch
          %201 = sbr.rel (%p199) target = $region32
        $region31: #{tpu_custom_call.1} parent=11 // pred_region
          _
        $region32: #{tpu_custom_call.1} parent=11 // pred_fallthru
          _
      $region12: #{tpu_custom_call.1} parent=5 // pred_fallthru
        _
      %p202 = scmp.lt.s32.totalorder %s15, 2
      // Predicated region
      $region33: #{tpu_custom_call.1} parent=5 // pred_check
        %p203 = pneg %p202
      $region34: #{tpu_custom_call.1} parent=5 // pred_check_branch
        %205 = sbr.rel (%p203) target = $region36
      $region35: #{tpu_custom_call.1} parent=5 // pred_region
        // Predicated region
        $region37: #{tpu_custom_call.1} parent=35 // pred_check
          %p206 = pneg %p35
        $region38: #{tpu_custom_call.1} parent=35 // pred_check_branch
          %208 = sbr.rel (%p206) target = $region40
        $region39: #{tpu_custom_call.1} parent=35 // pred_region
          %s209 = smul.u32 32, %s15
          %p210 = scmp.lt.s32.totalorder %s209, 63
          %s211 = scalar_select %p210, %s209, 63
          %s212 = smul.addr %s211, 8
          %s213 = scalar_lea.vmem %s0, %s212
          %s214 = smul.u32 32, %s15
        $region40: #{tpu_custom_call.1} parent=35 // pred_fallthru
          _
      $region36: #{tpu_custom_call.1} parent=5 // pred_fallthru
        _
      %p215 = scmp.le.s32.totalorder 1, %s15
      %p216 = scmp.lt.s32.totalorder %s15, 3
      %p217 = pnand %p215, %p216
      %p218 = pneg %p217
      // Predicated region
      $region41: #{tpu_custom_call.1} parent=5 // pred_check
        _
      $region42: #{tpu_custom_call.1} parent=5 // pred_check_branch
        %220 = sbr.rel (%p217) target = $region44
      $region43: #{tpu_custom_call.1} parent=5 // pred_region
        %s221 = ssub.s32 %s15, 1
        %s222 = smul.u32 32, %s20
        %p223 = scmp.lt.s32.totalorder %s222, 63
        %s224 = scalar_select %p223, %s222, 63
        %s225 = smul.addr %s224, 8
        %s226 = scalar_lea.vmem %s0, %s225
        %p227 = pneg %p41
        %p228 = pneg %p38
        %p229 = pneg %p62
        %p230 = pneg %p59
        %p231 = pneg %p83
        %p232 = pneg %p80
        %p233 = pneg %p104
        %p234 = pneg %p101
        %p235 = pneg %p125
        %p236 = pneg %p122
        %p237 = pneg %p146
        %p238 = pneg %p143
        %p239 = pneg %p172
        %p240 = pneg %p169
        %s241 = sand.u32 %s159, 1
        %s242 = scalar_lea.sflag [#allocation3], %s241
        %s243 = sand.u32 %s159, 1
        %s244 = smul.addr %s243, 4
        %s245 = scalar_lea.vmem [#allocation2], %s244
        %s246 = smul.u32 32, %s20
        %p247 = scmp.lt.s32.totalorder %s246, 63
        %s248 = scalar_select %p247, %s246, 63
        %s249 = smul.addr %s248, 8
        %s250 = scalar_lea.vmem %s0, %s249
        %s251 = smul.u32 32, %s20
        %s252 = smul.u32 2, %s20
        %v254 = vld [vmem:[%s250] sm:$0xff]
        %v255 = vld [vmem:[%s250 + $0x8] sm:$0xff]
        %v256 = vld [vmem:[%s250 + $0x10] sm:$0xff]
        %v257 = vld [vmem:[%s250 + $0x18] sm:$0xff]
        %v258 = vld [vmem:[%s250 + $0x20] sm:$0xff]
        %v259 = vld [vmem:[%s250 + $0x28] sm:$0xff]
        %v260 = vld [vmem:[%s250 + $0x30] sm:$0xff]
        %v261 = vld [vmem:[%s250 + $0x38] sm:$0xff]
        %v262 = vld [vmem:[%s250 + $0x40] sm:$0xff]
        %v263 = vld [vmem:[%s250 + $0x48] sm:$0xff]
        %v264 = vld [vmem:[%s250 + $0x50] sm:$0xff]
        %v265 = vld [vmem:[%s250 + $0x58] sm:$0xff]
        %v266 = vld [vmem:[%s250 + $0x60] sm:$0xff]
        %v267 = vld [vmem:[%s250 + $0x68] sm:$0xff]
        %v268 = vld [vmem:[%s250 + $0x70] sm:$0xff]
        %v269 = vld [vmem:[%s250 + $0x78] sm:$0xff]
        %v270 = vld [vmem:[%s250 + $0x80] sm:$0xff]
        %v271 = vld [vmem:[%s250 + $0x88] sm:$0xff]
        %v272 = vld [vmem:[%s250 + $0x90] sm:$0xff]
        %v273 = vld [vmem:[%s250 + $0x98] sm:$0xff]
        %v274 = vld [vmem:[%s250 + $0xa0] sm:$0xff]
        %v275 = vld [vmem:[%s250 + $0xa8] sm:$0xff]
        %v276 = vld [vmem:[%s250 + $0xb0] sm:$0xff]
        %v277 = vld [vmem:[%s250 + $0xb8] sm:$0xff]
        %v278 = vld [vmem:[%s250 + $0xc0] sm:$0xff]
        %v279 = vld [vmem:[%s250 + $0xc8] sm:$0xff]
        %v280 = vld [vmem:[%s250 + $0xd0] sm:$0xff]
        %v281 = vld [vmem:[%s250 + $0xd8] sm:$0xff]
        %v282 = vld [vmem:[%s250 + $0xe0] sm:$0xff]
        %v283 = vld [vmem:[%s250 + $0xe8] sm:$0xff]
        %v284 = vld [vmem:[%s250 + $0xf0] sm:$0xff]
        %v285 = vld [vmem:[%s250 + $0xf8] sm:$0xff]
        %v286 = vpack.c.bf16 %v255, %v254
        %v287 = vpack.c.bf16 %v257, %v256
        %v288 = vpack.c.bf16 %v259, %v258
        %v289 = vpack.c.bf16 %v261, %v260
        %v290 = vpack.c.bf16 %v263, %v262
        %v291 = vpack.c.bf16 %v265, %v264
        %v292 = vpack.c.bf16 %v267, %v266
        %v293 = vpack.c.bf16 %v269, %v268
        %v294 = vpack.c.bf16 %v271, %v270
        %v295 = vpack.c.bf16 %v273, %v272
        %v296 = vpack.c.bf16 %v275, %v274
        %v297 = vpack.c.bf16 %v277, %v276
        %v298 = vpack.c.bf16 %v279, %v278
        %v299 = vpack.c.bf16 %v281, %v280
        %v300 = vpack.c.bf16 %v283, %v282
        %v301 = vpack.c.bf16 %v285, %v284
        %v302 = vld [vmem:[%s1] sm:$0xf]
        %v303 = vld [vmem:[%s1 + $0x4] sm:$0xf]
        %v304 = vld [vmem:[%s4] sm:$0x1]
        %v305 = vlaneseq
        %v306 = vshrl.u32 %v305, 7
        %v307 = vsub.s32 0, %v306
        %v308 = vrot.slane %v304, %v307
        %v311 = vunpack.c.l.b16 %v302
        %v312 = vunpack.c.l.b16 %v303
        %v313 = vpack.c.b16 %v312, %v311
        %vm315 = vcmask 130048
        %v317 = vsel %vm315, %v286, 0
        %v320 = vsel %vm315, %v287, 0
        %v323 = vsel %vm315, %v288, 0
        %v326 = vsel %vm315, %v289, 0
        %v329 = vsel %vm315, %v290, 0
        %v332 = vsel %vm315, %v291, 0
        %v335 = vsel %vm315, %v292, 0
        %v338 = vsel %vm315, %v293, 0
        %v341 = vsel %vm315, %v294, 0
        %v344 = vsel %vm315, %v295, 0
        %v347 = vsel %vm315, %v296, 0
        %v350 = vsel %vm315, %v297, 0
        %v353 = vsel %vm315, %v298, 0
        %v356 = vsel %vm315, %v299, 0
        %v359 = vsel %vm315, %v300, 0
        %v362 = vsel %vm315, %v301, 0
        %364 = vmatprep.subr.bf16.mxu0 0
        %365 = vmatpush1.bf16.msra.mxu0 %v313
        %366 = vmatprep.subr.bf16.mxu0 0
        %367 = vmatpush1.bf16.msra.mxu0 0
        %368 = vmatprep.subr.bf16.mxu0 0
        %369 = vmatpush1.bf16.msra.mxu0 0
        %370 = vmatprep.subr.bf16.mxu0 0
        %371 = vmatpush1.bf16.msra.mxu0 0
        %372 = vmatprep.subr.bf16.mxu0 0
        %373 = vmatpush1.bf16.msra.mxu0 0
        %374 = vmatprep.subr.bf16.mxu0 0
        %375 = vmatpush1.bf16.msra.mxu0 0
        %376 = vmatprep.subr.bf16.mxu0 0
        %377 = vmatpush1.bf16.msra.mxu0 0
        %378 = vmatprep.subr.bf16.mxu0 0
        %379 = vmatpush1.bf16.msra.mxu0 0
        %380 = vmatprep.subr.bf16.mxu0 0
        %381 = vmatpush1.bf16.msra.mxu0 0
        %382 = vmatprep.subr.bf16.mxu0 0
        %383 = vmatpush1.bf16.msra.mxu0 0
        %384 = vmatprep.subr.bf16.mxu0 0
        %385 = vmatpush1.bf16.msra.mxu0 0
        %386 = vmatprep.subr.bf16.mxu0 0
        %387 = vmatpush1.bf16.msra.mxu0 0
        %388 = vmatprep.subr.bf16.mxu0 0
        %389 = vmatpush1.bf16.msra.mxu0 0
        %390 = vmatprep.subr.bf16.mxu0 0
        %391 = vmatpush1.bf16.msra.mxu0 0
        %392 = vmatprep.subr.bf16.mxu0 0
        %393 = vmatpush1.bf16.msra.mxu0 0
        %394 = vmatprep.subr.bf16.mxu0 0
        %395 = vmatpush1.bf16.msra.mxu0 0
        %396 = vmatprep.mubr.bf16.mxu0 0
        %397 = vmatmul.mubr.bf16.gmra.mrb[0].mxu0 %v317
        %v398 = vpop.f32.mrb[0].mxu0
        %v399 = vadd.f32 %v308, %v398
        %v400 = vpop.f32.mrb[0].mxu0
        %v401 = vpop.f32.mrb[0].mxu0
        %v402 = vadd.f32 %v308, %v401
        %v403 = vpop.f32.mrb[0].mxu0
        %404 = vmatprep.mubr.bf16.mxu0 0
        %405 = vmatmul.mubr.bf16.gmra.mrb[0].mxu0 %v320
        %v406 = vpop.f32.mrb[0].mxu0
        %v407 = vadd.f32 %v308, %v406
        %v408 = vpop.f32.mrb[0].mxu0
        %v409 = vpop.f32.mrb[0].mxu0
        %v410 = vadd.f32 %v308, %v409
        %v411 = vpop.f32.mrb[0].mxu0
        %412 = vmatprep.mubr.bf16.mxu0 0
        %413 = vmatmul.mubr.bf16.gmra.mrb[0].mxu0 %v323
        %v414 = vpop.f32.mrb[0].mxu0
        %v415 = vadd.f32 %v308, %v414
        %v416 = vpop.f32.mrb[0].mxu0
        %v417 = vpop.f32.mrb[0].mxu0
        %v418 = vadd.f32 %v308, %v417
        %v419 = vpop.f32.mrb[0].mxu0
        %420 = vmatprep.mubr.bf16.mxu0 0
        %421 = vmatmul.mubr.bf16.gmra.mrb[0].mxu0 %v326
        %v422 = vpop.f32.mrb[0].mxu0
        %v423 = vadd.f32 %v308, %v422
        %v424 = vpop.f32.mrb[0].mxu0
        %v425 = vpop.f32.mrb[0].mxu0
        %v426 = vadd.f32 %v308, %v425
        %v427 = vpop.f32.mrb[0].mxu0
        %428 = vmatprep.mubr.bf16.mxu0 0
        %429 = vmatmul.mubr.bf16.gmra.mrb[0].mxu0 %v329
        %v430 = vpop.f32.mrb[0].mxu0
        %v431 = vadd.f32 %v308, %v430
        %v432 = vpop.f32.mrb[0].mxu0
        %v433 = vpop.f32.mrb[0].mxu0
        %v434 = vadd.f32 %v308, %v433
        %v435 = vpop.f32.mrb[0].mxu0
        %436 = vmatprep.mubr.bf16.mxu0 0
        %437 = vmatmul.mubr.bf16.gmra.mrb[0].mxu0 %v332
        %v438 = vpop.f32.mrb[0].mxu0
        %v439 = vadd.f32 %v308, %v438
        %v440 = vpop.f32.mrb[0].mxu0
        %v441 = vpop.f32.mrb[0].mxu0
        %v442 = vadd.f32 %v308, %v441
        %v443 = vpop.f32.mrb[0].mxu0
        %444 = vmatprep.mubr.bf16.mxu0 0
        %445 = vmatmul.mubr.bf16.gmra.mrb[0].mxu0 %v335
        %v446 = vpop.f32.mrb[0].mxu0
        %v447 = vadd.f32 %v308, %v446
        %v448 = vpop.f32.mrb[0].mxu0
        %v449 = vpop.f32.mrb[0].mxu0
        %v450 = vadd.f32 %v308, %v449
        %v451 = vpop.f32.mrb[0].mxu0
        %452 = vmatprep.mubr.bf16.mxu0 0
        %453 = vmatmul.mubr.bf16.gmra.mrb[0].mxu0 %v338
        %v454 = vpop.f32.mrb[0].mxu0
        %v455 = vadd.f32 %v308, %v454
        %v456 = vpop.f32.mrb[0].mxu0
        %v457 = vpop.f32.mrb[0].mxu0
        %v458 = vadd.f32 %v308, %v457
        %v459 = vpop.f32.mrb[0].mxu0
        %460 = vmatprep.mubr.bf16.mxu0 0
        %461 = vmatmul.mubr.bf16.gmra.mrb[0].mxu0 %v341
        %v462 = vpop.f32.mrb[0].mxu0
        %v463 = vadd.f32 %v308, %v462
        %v464 = vpop.f32.mrb[0].mxu0
        %v465 = vpop.f32.mrb[0].mxu0
        %v466 = vadd.f32 %v308, %v465
        %v467 = vpop.f32.mrb[0].mxu0
        %468 = vmatprep.mubr.bf16.mxu0 0
        %469 = vmatmul.mubr.bf16.gmra.mrb[0].mxu0 %v344
        %v470 = vpop.f32.mrb[0].mxu0
        %v471 = vadd.f32 %v308, %v470
        %v472 = vpop.f32.mrb[0].mxu0
        %v473 = vpop.f32.mrb[0].mxu0
        %v474 = vadd.f32 %v308, %v473
        %v475 = vpop.f32.mrb[0].mxu0
        %476 = vmatprep.mubr.bf16.mxu0 0
        %477 = vmatmul.mubr.bf16.gmra.mrb[0].mxu0 %v347
        %v478 = vpop.f32.mrb[0].mxu0
        %v479 = vadd.f32 %v308, %v478
        %v480 = vpop.f32.mrb[0].mxu0
        %v481 = vpop.f32.mrb[0].mxu0
        %v482 = vadd.f32 %v308, %v481
        %v483 = vpop.f32.mrb[0].mxu0
        %484 = vmatprep.mubr.bf16.mxu0 0
        %485 = vmatmul.mubr.bf16.gmra.mrb[0].mxu0 %v350
        %v486 = vpop.f32.mrb[0].mxu0
        %v487 = vadd.f32 %v308, %v486
        %v488 = vpop.f32.mrb[0].mxu0
        %v489 = vpop.f32.mrb[0].mxu0
        %v490 = vadd.f32 %v308, %v489
        %v491 = vpop.f32.mrb[0].mxu0
        %492 = vmatprep.mubr.bf16.mxu0 0
        %493 = vmatmul.mubr.bf16.gmra.mrb[0].mxu0 %v353
        %v494 = vpop.f32.mrb[0].mxu0
        %v495 = vadd.f32 %v308, %v494
        %v496 = vpop.f32.mrb[0].mxu0
        %v497 = vpop.f32.mrb[0].mxu0
        %v498 = vadd.f32 %v308, %v497
        %v499 = vpop.f32.mrb[0].mxu0
        %500 = vmatprep.mubr.bf16.mxu0 0
        %501 = vmatmul.mubr.bf16.gmra.mrb[0].mxu0 %v356
        %v502 = vpop.f32.mrb[0].mxu0
        %v503 = vadd.f32 %v308, %v502
        %v504 = vpop.f32.mrb[0].mxu0
        %v505 = vpop.f32.mrb[0].mxu0
        %v506 = vadd.f32 %v308, %v505
        %v507 = vpop.f32.mrb[0].mxu0
        %508 = vmatprep.mubr.bf16.mxu0 0
        %509 = vmatmul.mubr.bf16.gmra.mrb[0].mxu0 %v359
        %v510 = vpop.f32.mrb[0].mxu0
        %v511 = vadd.f32 %v308, %v510
        %v512 = vpop.f32.mrb[0].mxu0
        %v513 = vpop.f32.mrb[0].mxu0
        %v514 = vadd.f32 %v308, %v513
        %v515 = vpop.f32.mrb[0].mxu0
        %516 = vmatprep.mubr.bf16.mxu0 0
        %517 = vmatmul.mubr.bf16.gmra.mrb[0].mxu0 %v362
        %v518 = vpop.f32.mrb[0].mxu0
        %v519 = vadd.f32 %v308, %v518
        %v520 = vpop.f32.mrb[0].mxu0
        %v521 = vpop.f32.mrb[0].mxu0
        %v522 = vadd.f32 %v308, %v521
        %v523 = vpop.f32.mrb[0].mxu0
        %524 = vdwg.mxu0
        %v525 = vmax.f32 %v399, 0.0
        %v526 = vmax.f32 %v402, 0.0
        %v527 = vmax.f32 %v407, 0.0
        %v528 = vmax.f32 %v410, 0.0
        %v529 = vmax.f32 %v415, 0.0
        %v530 = vmax.f32 %v418, 0.0
        %v531 = vmax.f32 %v423, 0.0
        %v532 = vmax.f32 %v426, 0.0
        %v533 = vmax.f32 %v431, 0.0
        %v534 = vmax.f32 %v434, 0.0
        %v535 = vmax.f32 %v439, 0.0
        %v536 = vmax.f32 %v442, 0.0
        %v537 = vmax.f32 %v447, 0.0
        %v538 = vmax.f32 %v450, 0.0
        %v539 = vmax.f32 %v455, 0.0
        %v540 = vmax.f32 %v458, 0.0
        %v541 = vmax.f32 %v463, 0.0
        %v542 = vmax.f32 %v466, 0.0
        %v543 = vmax.f32 %v471, 0.0
        %v544 = vmax.f32 %v474, 0.0
        %v545 = vmax.f32 %v479, 0.0
        %v546 = vmax.f32 %v482, 0.0
        %v547 = vmax.f32 %v487, 0.0
        %v548 = vmax.f32 %v490, 0.0
        %v549 = vmax.f32 %v495, 0.0
        %v550 = vmax.f32 %v498, 0.0
        %v551 = vmax.f32 %v503, 0.0
        %v552 = vmax.f32 %v506, 0.0
        %v553 = vmax.f32 %v511, 0.0
        %v554 = vmax.f32 %v514, 0.0
        %v555 = vmax.f32 %v519, 0.0
        %v556 = vmax.f32 %v522, 0.0
        %v557 = vpack.c.bf16 %v526, %v525
        %v558 = vpack.c.bf16 %v528, %v527
        %v559 = vpack.c.bf16 %v530, %v529
        %v560 = vpack.c.bf16 %v532, %v531
        %v561 = vpack.c.bf16 %v534, %v533
        %v562 = vpack.c.bf16 %v536, %v535
        %v563 = vpack.c.bf16 %v538, %v537
        %v564 = vpack.c.bf16 %v540, %v539
        %v565 = vpack.c.bf16 %v542, %v541
        %v566 = vpack.c.bf16 %v544, %v543
        %v567 = vpack.c.bf16 %v546, %v545
        %v568 = vpack.c.bf16 %v548, %v547
        %v569 = vpack.c.bf16 %v550, %v549
        %v570 = vpack.c.bf16 %v552, %v551
        %v571 = vpack.c.bf16 %v554, %v553
        %v572 = vpack.c.bf16 %v556, %v555
        %v573 = vld [vmem:[%s2] sm:$0xf]
        %v574 = vld [vmem:[%s2 + $0x4] sm:$0xf]
        %v575 = vld [vmem:[%s2 + $0x8] sm:$0xf]
        %v576 = vld [vmem:[%s2 + $0xc] sm:$0xf]
        %v577 = vld [vmem:[%s2 + $0x10] sm:$0xf]
        %v578 = vld [vmem:[%s2 + $0x14] sm:$0xf]
        %v579 = vld [vmem:[%s2 + $0x18] sm:$0xf]
        %v580 = vld [vmem:[%s2 + $0x1c] sm:$0xf]
        %v581 = vld [vmem:[%s2 + $0x20] sm:$0xf]
        %v582 = vld [vmem:[%s2 + $0x24] sm:$0xf]
        %v583 = vld [vmem:[%s2 + $0x28] sm:$0xf]
        %v584 = vld [vmem:[%s2 + $0x2c] sm:$0xf]
        %v585 = vld [vmem:[%s2 + $0x30] sm:$0xf]
        %v586 = vld [vmem:[%s2 + $0x34] sm:$0xf]
        %v587 = vld [vmem:[%s2 + $0x38] sm:$0xf]
        %v588 = vld [vmem:[%s2 + $0x3c] sm:$0xf]
        %v589 = vld [vmem:[%s4 + $0x1] sm:$0x1]
        %v590 = vlaneseq
        %v591 = vshrl.u32 %v590, 7
        %v592 = vsub.s32 0, %v591
        %v593 = vrot.slane %v589, %v592
        %v610 = vunpack.c.l.b16 %v573
        %v611 = vunpack.c.l.b16 %v574
        %v612 = vunpack.c.l.b16 %v575
        %v613 = vunpack.c.l.b16 %v576
        %v614 = vunpack.c.l.b16 %v577
        %v615 = vunpack.c.l.b16 %v578
        %v616 = vunpack.c.l.b16 %v579
        %v617 = vunpack.c.l.b16 %v580
        %v618 = vunpack.c.l.b16 %v581
        %v619 = vunpack.c.l.b16 %v582
        %v620 = vunpack.c.l.b16 %v583
        %v621 = vunpack.c.l.b16 %v584
        %v622 = vunpack.c.l.b16 %v585
        %v623 = vunpack.c.l.b16 %v586
        %v624 = vunpack.c.l.b16 %v587
        %v625 = vunpack.c.l.b16 %v588
        %v626 = vpack.c.b16 %v611, %v610
        %v627 = vpack.c.b16 %v613, %v612
        %v628 = vpack.c.b16 %v615, %v614
        %v629 = vpack.c.b16 %v617, %v616
        %v630 = vpack.c.b16 %v619, %v618
        %v631 = vpack.c.b16 %v621, %v620
        %v632 = vpack.c.b16 %v623, %v622
        %v633 = vpack.c.b16 %v625, %v624
        %642 = vmatprep.subr.bf16.mxu0 0
        %643 = vmatpush1.bf16.msra.mxu0 %v626
        %644 = vmatprep.subr.bf16.mxu0 0
        %645 = vmatpush1.bf16.msra.mxu0 %v627
        %646 = vmatprep.subr.bf16.mxu0 0
        %647 = vmatpush1.bf16.msra.mxu0 %v628
        %648 = vmatprep.subr.bf16.mxu0 0
        %649 = vmatpush1.bf16.msra.mxu0 %v629
        %650 = vmatprep.subr.bf16.mxu0 0
        %651 = vmatpush1.bf16.msra.mxu0 %v630
        %652 = vmatprep.subr.bf16.mxu0 0
        %653 = vmatpush1.bf16.msra.mxu0 %v631
        %654 = vmatprep.subr.bf16.mxu0 0
        %655 = vmatpush1.bf16.msra.mxu0 %v632
        %656 = vmatprep.subr.bf16.mxu0 0
        %657 = vmatpush1.bf16.msra.mxu0 %v633
        %658 = vmatprep.subr.bf16.mxu0 0
        %659 = vmatpush1.bf16.msra.mxu0 0
        %660 = vmatprep.subr.bf16.mxu0 0
        %661 = vmatpush1.bf16.msra.mxu0 0
        %662 = vmatprep.subr.bf16.mxu0 0
        %663 = vmatpush1.bf16.msra.mxu0 0
        %664 = vmatprep.subr.bf16.mxu0 0
        %665 = vmatpush1.bf16.msra.mxu0 0
        %666 = vmatprep.subr.bf16.mxu0 0
        %667 = vmatpush1.bf16.msra.mxu0 0
        %668 = vmatprep.subr.bf16.mxu0 0
        %669 = vmatpush1.bf16.msra.mxu0 0
        %670 = vmatprep.subr.bf16.mxu0 0
        %671 = vmatpush1.bf16.msra.mxu0 0
        %672 = vmatprep.subr.bf16.mxu0 0
        %673 = vmatpush1.bf16.msra.mxu0 0
        %674 = vmatprep.mubr.bf16.mxu0 0
        %675 = vmatmul.mubr.bf16.gmra.mrb[0].mxu0 %v557
        %v676 = vpop.f32.mrb[0].mxu0
        %v677 = vadd.f32 %v593, %v676
        %v678 = vpop.f32.mrb[0].mxu0
        %v679 = vpop.f32.mrb[0].mxu0
        %v680 = vadd.f32 %v593, %v679
        %v681 = vpop.f32.mrb[0].mxu0
        %682 = vmatprep.mubr.bf16.mxu0 0
        %683 = vmatmul.mubr.bf16.gmra.mrb[0].mxu0 %v558
        %v684 = vpop.f32.mrb[0].mxu0
        %v685 = vadd.f32 %v593, %v684
        %v686 = vpop.f32.mrb[0].mxu0
        %v687 = vpop.f32.mrb[0].mxu0
        %v688 = vadd.f32 %v593, %v687
        %v689 = vpop.f32.mrb[0].mxu0
        %690 = vmatprep.mubr.bf16.mxu0 0
        %691 = vmatmul.mubr.bf16.gmra.mrb[0].mxu0 %v559
        %v692 = vpop.f32.mrb[0].mxu0
        %v693 = vadd.f32 %v593, %v692
        %v694 = vpop.f32.mrb[0].mxu0
        %v695 = vpop.f32.mrb[0].mxu0
        %v696 = vadd.f32 %v593, %v695
        %v697 = vpop.f32.mrb[0].mxu0
        %698 = vmatprep.mubr.bf16.mxu0 0
        %699 = vmatmul.mubr.bf16.gmra.mrb[0].mxu0 %v560
        %v700 = vpop.f32.mrb[0].mxu0
        %v701 = vadd.f32 %v593, %v700
        %v702 = vpop.f32.mrb[0].mxu0
        %v703 = vpop.f32.mrb[0].mxu0
        %v704 = vadd.f32 %v593, %v703
        %v705 = vpop.f32.mrb[0].mxu0
        %706 = vmatprep.mubr.bf16.mxu0 0
        %707 = vmatmul.mubr.bf16.gmra.mrb[0].mxu0 %v561
        %v708 = vpop.f32.mrb[0].mxu0
        %v709 = vadd.f32 %v593, %v708
        %v710 = vpop.f32.mrb[0].mxu0
        %v711 = vpop.f32.mrb[0].mxu0
        %v712 = vadd.f32 %v593, %v711
        %v713 = vpop.f32.mrb[0].mxu0
        %714 = vmatprep.mubr.bf16.mxu0 0
        %715 = vmatmul.mubr.bf16.gmra.mrb[0].mxu0 %v562
        %v716 = vpop.f32.mrb[0].mxu0
        %v717 = vadd.f32 %v593, %v716
        %v718 = vpop.f32.mrb[0].mxu0
        %v719 = vpop.f32.mrb[0].mxu0
        %v720 = vadd.f32 %v593, %v719
        %v721 = vpop.f32.mrb[0].mxu0
        %722 = vmatprep.mubr.bf16.mxu0 0
        %723 = vmatmul.mubr.bf16.gmra.mrb[0].mxu0 %v563
        %v724 = vpop.f32.mrb[0].mxu0
        %v725 = vadd.f32 %v593, %v724
        %v726 = vpop.f32.mrb[0].mxu0
        %v727 = vpop.f32.mrb[0].mxu0
        %v728 = vadd.f32 %v593, %v727
        %v729 = vpop.f32.mrb[0].mxu0
        %730 = vmatprep.mubr.bf16.mxu0 0
        %731 = vmatmul.mubr.bf16.gmra.mrb[0].mxu0 %v564
        %v732 = vpop.f32.mrb[0].mxu0
        %v733 = vadd.f32 %v593, %v732
        %v734 = vpop.f32.mrb[0].mxu0
        %v735 = vpop.f32.mrb[0].mxu0
        %v736 = vadd.f32 %v593, %v735
        %v737 = vpop.f32.mrb[0].mxu0
        %738 = vmatprep.mubr.bf16.mxu0 0
        %739 = vmatmul.mubr.bf16.gmra.mrb[0].mxu0 %v565
        %v740 = vpop.f32.mrb[0].mxu0
        %v741 = vadd.f32 %v593, %v740
        %v742 = vpop.f32.mrb[0].mxu0
        %v743 = vpop.f32.mrb[0].mxu0
        %v744 = vadd.f32 %v593, %v743
        %v745 = vpop.f32.mrb[0].mxu0
        %746 = vmatprep.mubr.bf16.mxu0 0
        %747 = vmatmul.mubr.bf16.gmra.mrb[0].mxu0 %v566
        %v748 = vpop.f32.mrb[0].mxu0
        %v749 = vadd.f32 %v593, %v748
        %v750 = vpop.f32.mrb[0].mxu0
        %v751 = vpop.f32.mrb[0].mxu0
        %v752 = vadd.f32 %v593, %v751
        %v753 = vpop.f32.mrb[0].mxu0
        %754 = vmatprep.mubr.bf16.mxu0 0
        %755 = vmatmul.mubr.bf16.gmra.mrb[0].mxu0 %v567
        %v756 = vpop.f32.mrb[0].mxu0
        %v757 = vadd.f32 %v593, %v756
        %v758 = vpop.f32.mrb[0].mxu0
        %v759 = vpop.f32.mrb[0].mxu0
        %v760 = vadd.f32 %v593, %v759
        %v761 = vpop.f32.mrb[0].mxu0
        %762 = vmatprep.mubr.bf16.mxu0 0
        %763 = vmatmul.mubr.bf16.gmra.mrb[0].mxu0 %v568
        %v764 = vpop.f32.mrb[0].mxu0
        %v765 = vadd.f32 %v593, %v764
        %v766 = vpop.f32.mrb[0].mxu0
        %v767 = vpop.f32.mrb[0].mxu0
        %v768 = vadd.f32 %v593, %v767
        %v769 = vpop.f32.mrb[0].mxu0
        %770 = vmatprep.mubr.bf16.mxu0 0
        %771 = vmatmul.mubr.bf16.gmra.mrb[0].mxu0 %v569
        %v772 = vpop.f32.mrb[0].mxu0
        %v773 = vadd.f32 %v593, %v772
        %v774 = vpop.f32.mrb[0].mxu0
        %v775 = vpop.f32.mrb[0].mxu0
        %v776 = vadd.f32 %v593, %v775
        %v777 = vpop.f32.mrb[0].mxu0
        %778 = vmatprep.mubr.bf16.mxu0 0
        %779 = vmatmul.mubr.bf16.gmra.mrb[0].mxu0 %v570
        %v780 = vpop.f32.mrb[0].mxu0
        %v781 = vadd.f32 %v593, %v780
        %v782 = vpop.f32.mrb[0].mxu0
        %v783 = vpop.f32.mrb[0].mxu0
        %v784 = vadd.f32 %v593, %v783
        %v785 = vpop.f32.mrb[0].mxu0
        %786 = vmatprep.mubr.bf16.mxu0 0
        %787 = vmatmul.mubr.bf16.gmra.mrb[0].mxu0 %v571
        %v788 = vpop.f32.mrb[0].mxu0
        %v789 = vadd.f32 %v593, %v788
        %v790 = vpop.f32.mrb[0].mxu0
        %v791 = vpop.f32.mrb[0].mxu0
        %v792 = vadd.f32 %v593, %v791
        %v793 = vpop.f32.mrb[0].mxu0
        %794 = vmatprep.mubr.bf16.mxu0 0
        %795 = vmatmul.mubr.bf16.gmra.mrb[0].mxu0 %v572
        %v796 = vpop.f32.mrb[0].mxu0
        %v797 = vadd.f32 %v593, %v796
        %v798 = vpop.f32.mrb[0].mxu0
        %v799 = vpop.f32.mrb[0].mxu0
        %v800 = vadd.f32 %v593, %v799
        %v801 = vpop.f32.mrb[0].mxu0
        %802 = vdwg.mxu0
        %v803 = vmax.f32 %v677, 0.0
        %v804 = vmax.f32 %v680, 0.0
        %v805 = vmax.f32 %v685, 0.0
        %v806 = vmax.f32 %v688, 0.0
        %v807 = vmax.f32 %v693, 0.0
        %v808 = vmax.f32 %v696, 0.0
        %v809 = vmax.f32 %v701, 0.0
        %v810 = vmax.f32 %v704, 0.0
        %v811 = vmax.f32 %v709, 0.0
        %v812 = vmax.f32 %v712, 0.0
        %v813 = vmax.f32 %v717, 0.0
        %v814 = vmax.f32 %v720, 0.0
        %v815 = vmax.f32 %v725, 0.0
        %v816 = vmax.f32 %v728, 0.0
        %v817 = vmax.f32 %v733, 0.0
        %v818 = vmax.f32 %v736, 0.0
        %v819 = vmax.f32 %v741, 0.0
        %v820 = vmax.f32 %v744, 0.0
        %v821 = vmax.f32 %v749, 0.0
        %v822 = vmax.f32 %v752, 0.0
        %v823 = vmax.f32 %v757, 0.0
        %v824 = vmax.f32 %v760, 0.0
        %v825 = vmax.f32 %v765, 0.0
        %v826 = vmax.f32 %v768, 0.0
        %v827 = vmax.f32 %v773, 0.0
        %v828 = vmax.f32 %v776, 0.0
        %v829 = vmax.f32 %v781, 0.0
        %v830 = vmax.f32 %v784, 0.0
        %v831 = vmax.f32 %v789, 0.0
        %v832 = vmax.f32 %v792, 0.0
        %v833 = vmax.f32 %v797, 0.0
        %v834 = vmax.f32 %v800, 0.0
        %v835 = vpack.c.bf16 %v804, %v803
        %v836 = vpack.c.bf16 %v806, %v805
        %v837 = vpack.c.bf16 %v808, %v807
        %v838 = vpack.c.bf16 %v810, %v809
        %v839 = vpack.c.bf16 %v812, %v811
        %v840 = vpack.c.bf16 %v814, %v813
        %v841 = vpack.c.bf16 %v816, %v815
        %v842 = vpack.c.bf16 %v818, %v817
        %v843 = vpack.c.bf16 %v820, %v819
        %v844 = vpack.c.bf16 %v822, %v821
        %v845 = vpack.c.bf16 %v824, %v823
        %v846 = vpack.c.bf16 %v826, %v825
        %v847 = vpack.c.bf16 %v828, %v827
        %v848 = vpack.c.bf16 %v830, %v829
        %v849 = vpack.c.bf16 %v832, %v831
        %v850 = vpack.c.bf16 %v834, %v833
        %s851 = scalar_lea.vmem %s2, 64
        %v852 = vld [vmem:[%s851] sm:$0xf]
        %v853 = vld [vmem:[%s851 + $0x4] sm:$0xf]
        %v854 = vld [vmem:[%s851 + $0x8] sm:$0xf]
        %v855 = vld [vmem:[%s851 + $0xc] sm:$0xf]
        %v856 = vld [vmem:[%s851 + $0x10] sm:$0xf]
        %v857 = vld [vmem:[%s851 + $0x14] sm:$0xf]
        %v858 = vld [vmem:[%s851 + $0x18] sm:$0xf]
        %v859 = vld [vmem:[%s851 + $0x1c] sm:$0xf]
        %v860 = vld [vmem:[%s851 + $0x20] sm:$0xf]
        %v861 = vld [vmem:[%s851 + $0x24] sm:$0xf]
        %v862 = vld [vmem:[%s851 + $0x28] sm:$0xf]
        %v863 = vld [vmem:[%s851 + $0x2c] sm:$0xf]
        %v864 = vld [vmem:[%s851 + $0x30] sm:$0xf]
        %v865 = vld [vmem:[%s851 + $0x34] sm:$0xf]
        %v866 = vld [vmem:[%s851 + $0x38] sm:$0xf]
        %v867 = vld [vmem:[%s851 + $0x3c] sm:$0xf]
        %v868 = vld [vmem:[%s4 + $0x2] sm:$0x1]
        %v869 = vlaneseq
        %v870 = vshrl.u32 %v869, 7
        %v871 = vsub.s32 0, %v870
        %v872 = vrot.slane %v868, %v871
        %v889 = vunpack.c.l.b16 %v852
        %v890 = vunpack.c.l.b16 %v853
        %v891 = vunpack.c.l.b16 %v854
        %v892 = vunpack.c.l.b16 %v855
        %v893 = vunpack.c.l.b16 %v856
        %v894 = vunpack.c.l.b16 %v857
        %v895 = vunpack.c.l.b16 %v858
        %v896 = vunpack.c.l.b16 %v859
        %v897 = vunpack.c.l.b16 %v860
        %v898 = vunpack.c.l.b16 %v861
        %v899 = vunpack.c.l.b16 %v862
        %v900 = vunpack.c.l.b16 %v863
        %v901 = vunpack.c.l.b16 %v864
        %v902 = vunpack.c.l.b16 %v865
        %v903 = vunpack.c.l.b16 %v866
        %v904 = vunpack.c.l.b16 %v867
        %v905 = vpack.c.b16 %v890, %v889
        %v906 = vpack.c.b16 %v892, %v891
        %v907 = vpack.c.b16 %v894, %v893
        %v908 = vpack.c.b16 %v896, %v895
        %v909 = vpack.c.b16 %v898, %v897
        %v910 = vpack.c.b16 %v900, %v899
        %v911 = vpack.c.b16 %v902, %v901
        %v912 = vpack.c.b16 %v904, %v903
        %921 = vmatprep.subr.bf16.mxu0 0
        %922 = vmatpush1.bf16.msra.mxu0 %v905
        %923 = vmatprep.subr.bf16.mxu0 0
        %924 = vmatpush1.bf16.msra.mxu0 %v906
        %925 = vmatprep.subr.bf16.mxu0 0
        %926 = vmatpush1.bf16.msra.mxu0 %v907
        %927 = vmatprep.subr.bf16.mxu0 0
        %928 = vmatpush1.bf16.msra.mxu0 %v908
        %929 = vmatprep.subr.bf16.mxu0 0
        %930 = vmatpush1.bf16.msra.mxu0 %v909
        %931 = vmatprep.subr.bf16.mxu0 0
        %932 = vmatpush1.bf16.msra.mxu0 %v910
        %933 = vmatprep.subr.bf16.mxu0 0
        %934 = vmatpush1.bf16.msra.mxu0 %v911
        %935 = vmatprep.subr.bf16.mxu0 0
        %936 = vmatpush1.bf16.msra.mxu0 %v912
        %937 = vmatprep.subr.bf16.mxu0 0
        %938 = vmatpush1.bf16.msra.mxu0 0
        %939 = vmatprep.subr.bf16.mxu0 0
        %940 = vmatpush1.bf16.msra.mxu0 0
        %941 = vmatprep.subr.bf16.mxu0 0
        %942 = vmatpush1.bf16.msra.mxu0 0
        %943 = vmatprep.subr.bf16.mxu0 0
        %944 = vmatpush1.bf16.msra.mxu0 0
        %945 = vmatprep.subr.bf16.mxu0 0
        %946 = vmatpush1.bf16.msra.mxu0 0
        %947 = vmatprep.subr.bf16.mxu0 0
        %948 = vmatpush1.bf16.msra.mxu0 0
        %949 = vmatprep.subr.bf16.mxu0 0
        %950 = vmatpush1.bf16.msra.mxu0 0
        %951 = vmatprep.subr.bf16.mxu0 0
        %952 = vmatpush1.bf16.msra.mxu0 0
        %953 = vmatprep.mubr.bf16.mxu0 0
        %954 = vmatmul.mubr.bf16.gmra.mrb[0].mxu0 %v835
        %v955 = vpop.f32.mrb[0].mxu0
        %v956 = vadd.f32 %v872, %v955
        %v957 = vpop.f32.mrb[0].mxu0
        %v958 = vpop.f32.mrb[0].mxu0
        %v959 = vadd.f32 %v872, %v958
        %v960 = vpop.f32.mrb[0].mxu0
        %961 = vmatprep.mubr.bf16.mxu0 0
        %962 = vmatmul.mubr.bf16.gmra.mrb[0].mxu0 %v836
        %v963 = vpop.f32.mrb[0].mxu0
        %v964 = vadd.f32 %v872, %v963
        %v965 = vpop.f32.mrb[0].mxu0
        %v966 = vpop.f32.mrb[0].mxu0
        %v967 = vadd.f32 %v872, %v966
        %v968 = vpop.f32.mrb[0].mxu0
        %969 = vmatprep.mubr.bf16.mxu0 0
        %970 = vmatmul.mubr.bf16.gmra.mrb[0].mxu0 %v837
        %v971 = vpop.f32.mrb[0].mxu0
        %v972 = vadd.f32 %v872, %v971
        %v973 = vpop.f32.mrb[0].mxu0
        %v974 = vpop.f32.mrb[0].mxu0
        %v975 = vadd.f32 %v872, %v974
        %v976 = vpop.f32.mrb[0].mxu0
        %977 = vmatprep.mubr.bf16.mxu0 0
        %978 = vmatmul.mubr.bf16.gmra.mrb[0].mxu0 %v838
        %v979 = vpop.f32.mrb[0].mxu0
        %v980 = vadd.f32 %v872, %v979
        %v981 = vpop.f32.mrb[0].mxu0
        %v982 = vpop.f32.mrb[0].mxu0
        %v983 = vadd.f32 %v872, %v982
        %v984 = vpop.f32.mrb[0].mxu0
        %985 = vmatprep.mubr.bf16.mxu0 0
        %986 = vmatmul.mubr.bf16.gmra.mrb[0].mxu0 %v839
        %v987 = vpop.f32.mrb[0].mxu0
        %v988 = vadd.f32 %v872, %v987
        %v989 = vpop.f32.mrb[0].mxu0
        %v990 = vpop.f32.mrb[0].mxu0
        %v991 = vadd.f32 %v872, %v990
        %v992 = vpop.f32.mrb[0].mxu0
        %993 = vmatprep.mubr.bf16.mxu0 0
        %994 = vmatmul.mubr.bf16.gmra.mrb[0].mxu0 %v840
        %v995 = vpop.f32.mrb[0].mxu0
        %v996 = vadd.f32 %v872, %v995
        %v997 = vpop.f32.mrb[0].mxu0
        %v998 = vpop.f32.mrb[0].mxu0
        %v999 = vadd.f32 %v872, %v998
        %v1000 = vpop.f32.mrb[0].mxu0
        %1001 = vmatprep.mubr.bf16.mxu0 0
        %1002 = vmatmul.mubr.bf16.gmra.mrb[0].mxu0 %v841
        %v1003 = vpop.f32.mrb[0].mxu0
        %v1004 = vadd.f32 %v872, %v1003
        %v1005 = vpop.f32.mrb[0].mxu0
        %v1006 = vpop.f32.mrb[0].mxu0
        %v1007 = vadd.f32 %v872, %v1006
        %v1008 = vpop.f32.mrb[0].mxu0
        %1009 = vmatprep.mubr.bf16.mxu0 0
        %1010 = vmatmul.mubr.bf16.gmra.mrb[0].mxu0 %v842
        %v1011 = vpop.f32.mrb[0].mxu0
        %v1012 = vadd.f32 %v872, %v1011
        %v1013 = vpop.f32.mrb[0].mxu0
        %v1014 = vpop.f32.mrb[0].mxu0
        %v1015 = vadd.f32 %v872, %v1014
        %v1016 = vpop.f32.mrb[0].mxu0
        %1017 = vmatprep.mubr.bf16.mxu0 0
        %1018 = vmatmul.mubr.bf16.gmra.mrb[0].mxu0 %v843
        %v1019 = vpop.f32.mrb[0].mxu0
        %v1020 = vadd.f32 %v872, %v1019
        %v1021 = vpop.f32.mrb[0].mxu0
        %v1022 = vpop.f32.mrb[0].mxu0
        %v1023 = vadd.f32 %v872, %v1022
        %v1024 = vpop.f32.mrb[0].mxu0
        %1025 = vmatprep.mubr.bf16.mxu0 0
        %1026 = vmatmul.mubr.bf16.gmra.mrb[0].mxu0 %v844
        %v1027 = vpop.f32.mrb[0].mxu0
        %v1028 = vadd.f32 %v872, %v1027
        %v1029 = vpop.f32.mrb[0].mxu0
        %v1030 = vpop.f32.mrb[0].mxu0
        %v1031 = vadd.f32 %v872, %v1030
        %v1032 = vpop.f32.mrb[0].mxu0
        %1033 = vmatprep.mubr.bf16.mxu0 0
        %1034 = vmatmul.mubr.bf16.gmra.mrb[0].mxu0 %v845
        %v1035 = vpop.f32.mrb[0].mxu0
        %v1036 = vadd.f32 %v872, %v1035
        %v1037 = vpop.f32.mrb[0].mxu0
        %v1038 = vpop.f32.mrb[0].mxu0
        %v1039 = vadd.f32 %v872, %v1038
        %v1040 = vpop.f32.mrb[0].mxu0
        %1041 = vmatprep.mubr.bf16.mxu0 0
        %1042 = vmatmul.mubr.bf16.gmra.mrb[0].mxu0 %v846
        %v1043 = vpop.f32.mrb[0].mxu0
        %v1044 = vadd.f32 %v872, %v1043
        %v1045 = vpop.f32.mrb[0].mxu0
        %v1046 = vpop.f32.mrb[0].mxu0
        %v1047 = vadd.f32 %v872, %v1046
        %v1048 = vpop.f32.mrb[0].mxu0
        %1049 = vmatprep.mubr.bf16.mxu0 0
        %1050 = vmatmul.mubr.bf16.gmra.mrb[0].mxu0 %v847
        %v1051 = vpop.f32.mrb[0].mxu0
        %v1052 = vadd.f32 %v872, %v1051
        %v1053 = vpop.f32.mrb[0].mxu0
        %v1054 = vpop.f32.mrb[0].mxu0
        %v1055 = vadd.f32 %v872, %v1054
        %v1056 = vpop.f32.mrb[0].mxu0
        %1057 = vmatprep.mubr.bf16.mxu0 0
        %1058 = vmatmul.mubr.bf16.gmra.mrb[0].mxu0 %v848
        %v1059 = vpop.f32.mrb[0].mxu0
        %v1060 = vadd.f32 %v872, %v1059
        %v1061 = vpop.f32.mrb[0].mxu0
        %v1062 = vpop.f32.mrb[0].mxu0
        %v1063 = vadd.f32 %v872, %v1062
        %v1064 = vpop.f32.mrb[0].mxu0
        %1065 = vmatprep.mubr.bf16.mxu0 0
        %1066 = vmatmul.mubr.bf16.gmra.mrb[0].mxu0 %v849
        %v1067 = vpop.f32.mrb[0].mxu0
        %v1068 = vadd.f32 %v872, %v1067
        %v1069 = vpop.f32.mrb[0].mxu0
        %v1070 = vpop.f32.mrb[0].mxu0
        %v1071 = vadd.f32 %v872, %v1070
        %v1072 = vpop.f32.mrb[0].mxu0
        %1073 = vmatprep.mubr.bf16.mxu0 0
        %1074 = vmatmul.mubr.bf16.gmra.mrb[0].mxu0 %v850
        %v1075 = vpop.f32.mrb[0].mxu0
        %v1076 = vadd.f32 %v872, %v1075
        %v1077 = vpop.f32.mrb[0].mxu0
        %v1078 = vpop.f32.mrb[0].mxu0
        %v1079 = vadd.f32 %v872, %v1078
        %v1080 = vpop.f32.mrb[0].mxu0
        %1081 = vdwg.mxu0
        %v1082 = vmax.f32 %v956, 0.0
        %v1083 = vmax.f32 %v959, 0.0
        %v1084 = vmax.f32 %v964, 0.0
        %v1085 = vmax.f32 %v967, 0.0
        %v1086 = vmax.f32 %v972, 0.0
        %v1087 = vmax.f32 %v975, 0.0
        %v1088 = vmax.f32 %v980, 0.0
        %v1089 = vmax.f32 %v983, 0.0
        %v1090 = vmax.f32 %v988, 0.0
        %v1091 = vmax.f32 %v991, 0.0
        %v1092 = vmax.f32 %v996, 0.0
        %v1093 = vmax.f32 %v999, 0.0
        %v1094 = vmax.f32 %v1004, 0.0
        %v1095 = vmax.f32 %v1007, 0.0
        %v1096 = vmax.f32 %v1012, 0.0
        %v1097 = vmax.f32 %v1015, 0.0
        %v1098 = vmax.f32 %v1020, 0.0
        %v1099 = vmax.f32 %v1023, 0.0
        %v1100 = vmax.f32 %v1028, 0.0
        %v1101 = vmax.f32 %v1031, 0.0
        %v1102 = vmax.f32 %v1036, 0.0
        %v1103 = vmax.f32 %v1039, 0.0
        %v1104 = vmax.f32 %v1044, 0.0
        %v1105 = vmax.f32 %v1047, 0.0
        %v1106 = vmax.f32 %v1052, 0.0
        %v1107 = vmax.f32 %v1055, 0.0
        %v1108 = vmax.f32 %v1060, 0.0
        %v1109 = vmax.f32 %v1063, 0.0
        %v1110 = vmax.f32 %v1068, 0.0
        %v1111 = vmax.f32 %v1071, 0.0
        %v1112 = vmax.f32 %v1076, 0.0
        %v1113 = vmax.f32 %v1079, 0.0
        %v1114 = vld [vmem:[%s3] sm:$0xf]
        %v1115 = vld [vmem:[%s3 + $0x4] sm:$0xf]
        %v1116 = vpack.c.bf16 %v1083, %v1082
        %v1117 = vpack.c.bf16 %v1085, %v1084
        %v1118 = vpack.c.bf16 %v1087, %v1086
        %v1119 = vpack.c.bf16 %v1089, %v1088
        %v1120 = vpack.c.bf16 %v1091, %v1090
        %v1121 = vpack.c.bf16 %v1093, %v1092
        %v1122 = vpack.c.bf16 %v1095, %v1094
        %v1123 = vpack.c.bf16 %v1097, %v1096
        %v1124 = vpack.c.bf16 %v1099, %v1098
        %v1125 = vpack.c.bf16 %v1101, %v1100
        %v1126 = vpack.c.bf16 %v1103, %v1102
        %v1127 = vpack.c.bf16 %v1105, %v1104
        %v1128 = vpack.c.bf16 %v1107, %v1106
        %v1129 = vpack.c.bf16 %v1109, %v1108
        %v1130 = vpack.c.bf16 %v1111, %v1110
        %v1131 = vpack.c.bf16 %v1113, %v1112
        %v1134 = vunpack.c.l.b16 %v1114
        %v1135 = vunpack.c.l.b16 %v1115
        %v1136 = vpack.c.b16 %v1135, %v1134
        %1138 = vmatprep.subr.bf16.mxu0 0
        %1139 = vmatpush1.bf16.xpose.msra.mxu0 %v1116
        %1140 = vmatprep.subr.bf16.mxu0 0
        %1141 = vmatpush1.bf16.xpose.msra.mxu0 %v1117
        %1142 = vmatprep.subr.bf16.mxu0 0
        %1143 = vmatpush1.bf16.xpose.msra.mxu0 %v1118
        %1144 = vmatprep.subr.bf16.mxu0 0
        %1145 = vmatpush1.bf16.xpose.msra.mxu0 %v1119
        %1146 = vmatprep.subr.bf16.mxu0 0
        %1147 = vmatpush1.bf16.xpose.msra.mxu0 %v1120
        %1148 = vmatprep.subr.bf16.mxu0 0
        %1149 = vmatpush1.bf16.xpose.msra.mxu0 %v1121
        %1150 = vmatprep.subr.bf16.mxu0 0
        %1151 = vmatpush1.bf16.xpose.msra.mxu0 %v1122
        %1152 = vmatprep.subr.bf16.mxu0 0
        %1153 = vmatpush1.bf16.xpose.msra.mxu0 %v1123
        %1154 = vmatprep.subr.bf16.mxu0 0
        %1155 = vmatpush1.bf16.xpose.msra.mxu0 %v1124
        %1156 = vmatprep.subr.bf16.mxu0 0
        %1157 = vmatpush1.bf16.xpose.msra.mxu0 %v1125
        %1158 = vmatprep.subr.bf16.mxu0 0
        %1159 = vmatpush1.bf16.xpose.msra.mxu0 %v1126
        %1160 = vmatprep.subr.bf16.mxu0 0
        %1161 = vmatpush1.bf16.xpose.msra.mxu0 %v1127
        %1162 = vmatprep.subr.bf16.mxu0 0
        %1163 = vmatpush1.bf16.xpose.msra.mxu0 %v1128
        %1164 = vmatprep.subr.bf16.mxu0 0
        %1165 = vmatpush1.bf16.xpose.msra.mxu0 %v1129
        %1166 = vmatprep.subr.bf16.mxu0 0
        %1167 = vmatpush1.bf16.xpose.msra.mxu0 %v1130
        %1168 = vmatprep.subr.bf16.mxu0 0
        %1169 = vmatpush1.bf16.xpose.msra.mxu0 %v1131
        %1170 = vmatprep.mubr.bf16.mxu0 0
        %1171 = vmatmul.mubr.bf16.gmra.mrb[0].mxu0 %v1136
        %v1172 = vpop.f32.mrb[0].mxu0
        %v1173 = vadd.f32 0.0, %v1172
        %v1174 = vpop.f32.mrb[0].mxu0
        %v1175 = vadd.f32 0.0, %v1174
        %v1176 = vpop.f32.mrb[0].mxu0
        %v1177 = vpop.f32.mrb[0].mxu0
        %1178 = vdwg.mxu0
        %v1179 = vld [vmem:[%s5] sm:$0x3]
        %1181 = vset.pattern.permute.xlu0 0
        %1182 = vperm.xlu0 %1181, %v1179
        %v1183 = vpop.permute.xlu0 %1182
        %v1185 = vadd.f32 %v1173, %v1183
        %v1186 = vadd.f32 %v1175, %v1183
        %v1187 = vand.u32 2147483647, %v1185
        %v1188 = vrcp.pop 6.2831855
        %v1189 = vmul.f32 %v1187, %v1188
        %v1190 = vfloor.f32 %v1189
        %v1191 = vmul.f32 %v1190, 6.2831855
        %v1192 = vsub.f32 %v1187, %v1191
        %vm1193 = vcmp.eq.f32.partialorder %v1192, 6.2831855
        %v1194 = vsel %vm1193, 0.0, %v1192
        %v1195 = vand.u32 2147483647, %v1194
        %v1196 = vand.u32 %v1185, 2147483648
        %v1197 = vor.u32 %v1195, %v1196
        %v1198 = vand.u32 2147483647, %v1186
        %v1199 = vrcp.pop 6.2831855
        %v1200 = vmul.f32 %v1198, %v1199
        %v1201 = vfloor.f32 %v1200
        %v1202 = vmul.f32 %v1201, 6.2831855
        %v1203 = vsub.f32 %v1198, %v1202
        %vm1204 = vcmp.eq.f32.partialorder %v1203, 6.2831855
        %v1205 = vsel %vm1204, 0.0, %v1203
        %v1206 = vand.u32 2147483647, %v1205
        %v1207 = vand.u32 %v1186, 2147483648
        %v1208 = vor.u32 %v1206, %v1207
        %vm1209 = vcmp.ne.f32.partialorder %v1197, 0.0
        %vm1210 = vcmp.ne.f32.partialorder %v1208, 0.0
        %vm1211 = vcmp.lt.f32.partialorder %v1197, 0.0
        %vm1212 = vcmp.lt.f32.partialorder %v1208, 0.0
        %vm1213 = vmand %vm1211, %vm1209
        %vm1214 = vmand %vm1212, %vm1210
        %v1215 = vadd.f32 %v1197, 6.2831855
        %v1216 = vadd.f32 %v1208, 6.2831855
        %v1217 = vsel %vm1213, %v1215, %v1197
        %v1218 = vsel %vm1214, %v1216, %v1208
        %v1219 = vmax.f32 %v1185, -3.0
        %v1220 = vmax.f32 %v1186, -3.0
        %v1221 = vmin.f32 %v1219, 3.0
        %v1222 = vmin.f32 %v1220, 3.0
        %v1223 = vmul.f32 %v1221, 1.442695
        %v1224 = vpow.pop %v1223
        %v1225 = vmul.f32 %v1222, 1.442695
        %v1226 = vpow.pop %v1225
        %vm1227 = vcmask 1040384
        %v1228 = vsel %vm1227, %v1217, %v1224
        %v1229 = vsel %vm1227, %v1218, %v1226
        %v1232 = vcombine.low %v1228, %v1229
        %v1234 = vunpack.c.l.s4 1983009808
        %v1235 = vunpack.c.0.s8 %v1234
        %v1236 = vlaneseq
        %v1237 = vshrl.u32 %v1236, 7
        %v1238 = vsub.s32 %v1235, %v1237
        %v1239 = vrot.slane %v1232, %v1238
        %1241 = vst [vmem:[%s245] sm:$0xf] %v1239
        %s1242 = sand.u32 %s159, 1
        %s1243 = scalar_lea.sflag [#allocation3], %s1242
        %s1244 = sand.u32 %s159, 1
        %s1245 = smul.addr %s1244, 4
        %s1246 = scalar_lea.vmem [#allocation2], %s1245
        // Predicated region
        $region45: #{tpu_custom_call.1} parent=43 // pred_check
          %p1247 = pneg %p169
        $region46: #{tpu_custom_call.1} parent=43 // pred_check_branch
          %1249 = sbr.rel (%p1247) target = $region48
        $region47: #{tpu_custom_call.1} parent=43 // pred_region
          %s1250 = smul.u32 2, %s20
          %s1252 = ssub.s32 64, 64
          %1253 = vsyncadd %s1243, %s1252
          %s1254 = smul.addr %s1250, 32
          %s1255 = scalar_lea.hbm %s6, %s1254
          %s1257 = sshll.u32 %s1246, 4
          %s1258 = int_to_ptr.vmem [resolvable:$true] %s1257
          %1260 = dma.vmem_to_hbm [thread:$0]  %s1258, 64, %s1255, %s1243
        $region48: #{tpu_custom_call.1} parent=43 // pred_fallthru
          _
      $region44: #{tpu_custom_call.1} parent=5 // pred_fallthru
        _
      %p1261 = scmp.le.s32.totalorder 2, %s15
      // Predicated region
      $region49: #{tpu_custom_call.1} parent=5 // pred_check
        %p1262 = pneg %p1261
      $region50: #{tpu_custom_call.1} parent=5 // pred_check_branch
        %1264 = sbr.rel (%p1262) target = $region52
      $region51: #{tpu_custom_call.1} parent=5 // pred_region
        %s1265 = ssub.s32 %s15, 2
        // Predicated region
        $region53: #{tpu_custom_call.1} parent=51 // pred_check
          %p1266 = pneg %p175
        $region54: #{tpu_custom_call.1} parent=51 // pred_check_branch
          %1268 = sbr.rel (%p1266) target = $region56
        $region55: #{tpu_custom_call.1} parent=51 // pred_region
          %s1269 = sand.u32 %s160, 1
          %s1270 = scalar_lea.sflag [#allocation3], %s1269
          %s1271 = sand.u32 %s160, 1
          %s1272 = smul.addr %s1271, 4
          %s1273 = scalar_lea.vmem [#allocation2], %s1272
          %1274 = dma.done %s1270, 64
        $region56: #{tpu_custom_call.1} parent=51 // pred_fallthru
          _
      $region52: #{tpu_custom_call.1} parent=5 // pred_fallthru
        _
    $region6: #{tpu_custom_call.1} parent=1 // loop_footer
      %s19 = sadd.s32 1, %s15
    $region7: #{tpu_custom_call.1} parent=1 // loop_footer_branch
      %14 = sbr.rel target = $region3
    $region8: #{tpu_custom_call.1} parent=1 // loop_exit
      _
    %1275 = vsyncpa [#allocation3], 1
    %s1276 = scalar_lea.sflag [#allocation3], 1
    %1277 = vsyncpa %s1276, 1

</llo_original>
